<compile_context>
chip_gen: v7x
topology: tpu7x:2x2x1
jax: 0.10.0
libtpu: 0.0.40
codegen_flags: <defaults>
</compile_context>

<pallas_src>
import jax
import jax.numpy as jnp
from jax.experimental import pallas as pl
from jax.experimental.pallas import tpu as pltpu

IN_FEATURES = 10
HIDDEN = 64
HID_PAD = 128      # hidden dim 64 zero-padded to one full 128-lane vreg
LANES = 128        # output lanes = batch rows packed per output row

_TB_TARGET = 2048       # rows per grid step (sweep range 1024-4096)
_MULTISTEP_TB = 1024    # multi-step tiles are multiples of 1024 so the
                        # (tb//128, 128) output block stays (8,128)-aligned


def hypermind_kernel(x_ref, w1_ref, b1_ref, w2_ref, b2_ref, o_ref):
    # x_ref:  (TB, IN)         f32 VMEM batch tile
    # w1_ref: (IN, HID_PAD)    f32 VMEM (resident across grid steps)
    # b1_ref: (1, HID_PAD)     f32 VMEM (resident)
    # w2_ref: (HID_PAD, 1)     f32 VMEM column vector (resident)
    # b2_ref: (1,)             f32 SMEM scalar
    # o_ref:  (TB//128, 128)   f32 VMEM, batch packed on the lane axis
    w1 = w1_ref[...]
    b1 = b1_ref[...]
    w2 = w2_ref[...]            # (HID_PAD, 1)
    b2 = b2_ref[0]
    n_chunks = o_ref.shape[0]   # static

    for c in range(n_chunks):   # static, unrolled: one 128-row chunk per iter
        x_c = x_ref[c * LANES:(c + 1) * LANES, :]            # (128, IN)
        # fc1 on the MXU, f32 accumulate; padded hidden columns are exactly 0.
        h_c = jnp.dot(x_c, w1, preferred_element_type=jnp.float32) + b1
        h_c = jnp.maximum(h_c, 0.0)                          # (128, HID_PAD)
        # fc2 on the VPU/XLU: transpose the chunk (XLU has slack here) so the
        # batch lands on lanes, then multiply by the w2 column and reduce over
        # sublanes. Result is born lane-dense -> full unmasked vst.
        ht = h_c.T                                           # (HID_PAD, 128)
        row = jnp.sum(ht * w2, axis=0, keepdims=True) + b2   # (1, 128)
        o_ref[pl.ds(c, 1), :] = row.astype(o_ref.dtype)


def _round_up(n, m):
    return ((n + m - 1) // m) * m


def _tiling(batch):
    """Return (b_pad, tb): padded batch and rows per grid step.

    tb is a multiple of 128 (lane packing); multi-step tilings use multiples of
    1024 so the output block second-minor dim (tb//128) stays a multiple of 8,
    and keep >= 2 grid steps so v7x megacore gets both TensorCores busy.
    """
    b_pad = _round_up(max(batch, 1), LANES)
    if b_pad < 2 * _MULTISTEP_TB:
        return b_pad, b_pad                      # single lane-aligned tile
    b_pad = _round_up(b_pad, _MULTISTEP_TB)
    m = b_pad // _MULTISTEP_TB                   # >= 2
    d = 1
    for cand in range(2, m // 2 + 1):            # largest divisor, >=2 steps
        if m % cand == 0 and cand * _MULTISTEP_TB <= _TB_TARGET:
            d = cand
    return b_pad, d * _MULTISTEP_TB


def prepare_params(w1, b1, w2, b2):
    """Zero-pad parameters to lane-aligned widths ONCE (outside the per-call
    jit). Exact: padded hidden units produce relu(0)=0 and contribute 0 to fc2.
    w1: (10, 64) (in, out); b1: (64,)/(1,64); w2: (64, 1); b2: scalar/(1,1)."""
    in_f, h = w1.shape
    w1p = jnp.zeros((in_f, HID_PAD), jnp.float32).at[:, :h].set(w1.astype(jnp.float32))
    b1p = jnp.zeros((1, HID_PAD), jnp.float32).at[:, :h].set(
        jnp.reshape(b1, (1, h)).astype(jnp.float32))
    w2col = jnp.zeros((HID_PAD, 1), jnp.float32).at[:h, :].set(
        jnp.reshape(w2, (h, 1)).astype(jnp.float32))
    b2s = jnp.reshape(b2, (1,)).astype(jnp.float32)
    return w1p, b1p, w2col, b2s


@jax.jit
def hypermind_forward(x, w1p, b1p, w2col, b2s):
    """x: (B, 10) f32; padded params from prepare_params. Returns (B, 1) f32."""
    B, in_f = x.shape
    b_pad, tb = _tiling(B)

    x = x.astype(jnp.float32)
    if b_pad != B:  # only ragged batches pay a pad copy of x
        x = jnp.zeros((b_pad, in_f), jnp.float32).at[:B].set(x)

    grid = (b_pad // tb,)
    cost = pl.CostEstimate(
        flops=2 * b_pad * in_f * HID_PAD + 3 * b_pad * HID_PAD,
        transcendentals=0,
        bytes_accessed=4 * (b_pad * in_f + b_pad
                            + in_f * HID_PAD + 2 * HID_PAD + 1),
    )

    out = pl.pallas_call(
        hypermind_kernel,
        out_shape=jax.ShapeDtypeStruct((b_pad // LANES, LANES), jnp.float32),
        grid=grid,
        in_specs=[
            pl.BlockSpec((tb, in_f), lambda i: (i, 0)),           # x batch tile
            pl.BlockSpec((in_f, HID_PAD), lambda i: (0, 0)),      # w1 (resident)
            pl.BlockSpec((1, HID_PAD), lambda i: (0, 0)),         # b1 (resident)
            pl.BlockSpec((HID_PAD, 1), lambda i: (0, 0)),         # w2 col (resident)
            pl.BlockSpec(memory_space=pltpu.MemorySpace.SMEM),    # b2 scalar
        ],
        out_specs=pl.BlockSpec((tb // LANES, LANES), lambda i: (i, 0)),
        compiler_params=pltpu.CompilerParams(
            dimension_semantics=("parallel",),                    # megacore on v7x
        ),
        cost_estimate=cost,
    )(x, w1p, b1p, w2col, b2s)

    # Batch was packed onto lanes row-major: (c, j) -> row c*128 + j.
    return out.reshape(-1)[:B].reshape(B, 1)


def init_params(key):
    # Deterministic init mimicking PyTorch Linear default (uniform(+-1/sqrt(fan_in))).
    k1, k2, k3, k4 = jax.random.split(key, 4)
    bound1 = 1.0 / jnp.sqrt(float(IN_FEATURES))
    bound2 = 1.0 / jnp.sqrt(float(HIDDEN))
    w1 = jax.random.uniform(k1, (IN_FEATURES, HIDDEN), jnp.float32, -bound1, bound1)
    b1 = jax.random.uniform(k2, (1, HIDDEN), jnp.float32, -bound1, bound1)
    w2 = jax.random.uniform(k3, (HIDDEN, 1), jnp.float32, -bound2, bound2)
    b2 = jax.random.uniform(k4, (1, 1), jnp.float32, -bound2, bound2)
    return w1, b1, w2, b2


# TODO(synk): train_model (sklearn diabetes data + Adam loop) is a host-side
# training utility, not part of the forward pass; not translated to Pallas.


if __name__ == "__main__":
    key = jax.random.PRNGKey(0)
    kx, kp = jax.random.split(key)
    x = jax.random.normal(kx, (8, IN_FEATURES), jnp.float32)  # batch=8, in=10
    w1, b1, w2, b2 = init_params(kp)
    w1p, b1p, w2col, b2s = prepare_params(w1, b1, w2, b2)     # pad once

    out = hypermind_forward(x, w1p, b1p, w2col, b2s)
    out = jax.block_until_ready(out)

    # Reference check in plain JAX.
    ref = jnp.maximum(x @ w1 + b1, 0.0) @ w2 + b2
    assert out.shape == (8, 1)
    assert jnp.allclose(out, ref, atol=1e-5, rtol=1e-5)

    print("KERNEL_OK")
</pallas_src>

<mosaic_0001>
module attributes {stable_mosaic.version = 11 : i64} {
  func.func @hypermind_kernel(%arg0: i32, %arg1: memref<128x10xf32, #tpu.memory_space<vmem>>, %arg2: memref<10x128xf32, #tpu.memory_space<vmem>>, %arg3: memref<1x128xf32, #tpu.memory_space<vmem>>, %arg4: memref<128x1xf32, #tpu.memory_space<vmem>>, %arg5: memref<1xf32, #tpu.memory_space<smem>>, %arg6: memref<1x128xf32, #tpu.memory_space<vmem>>) attributes {dimension_semantics = [#tpu.dimension_semantics<parallel>], iteration_bounds = array<i64: 1>, scalar_prefetch = 0 : i64, scratch_operands = 0 : i64, tpu.core_type = #tpu.core_type<tc>, window_params = [{transform_indices = @transform_0, window_bounds = array<i64: 128, 10>}, {pipeline_mode = #tpu.pipeline_mode<synchronous>, transform_indices = @transform_1, window_bounds = array<i64: 10, 128>}, {pipeline_mode = #tpu.pipeline_mode<synchronous>, transform_indices = @transform_2, window_bounds = array<i64: 1, 128>}, {pipeline_mode = #tpu.pipeline_mode<synchronous>, transform_indices = @transform_3, window_bounds = array<i64: 128, 1>}, {transform_indices = @transform_4, window_bounds = array<i64: 1>}, {transform_indices = @transform_5, window_bounds = array<i64: 1, 128>}]} {
    %c0 = arith.constant 0 : index
    %c0_0 = arith.constant 0 : index
    %0 = vector.load %arg2[%c0, %c0_0] : memref<10x128xf32, #tpu.memory_space<vmem>>, vector<10x128xf32>
    %c0_1 = arith.constant 0 : index
    %c0_2 = arith.constant 0 : index
    %1 = vector.load %arg3[%c0_1, %c0_2] : memref<1x128xf32, #tpu.memory_space<vmem>>, vector<1x128xf32>
    %c0_3 = arith.constant 0 : index
    %c0_4 = arith.constant 0 : index
    %2 = vector.load %arg4[%c0_3, %c0_4] : memref<128x1xf32, #tpu.memory_space<vmem>>, vector<128x1xf32>
    %c0_5 = arith.constant 0 : index
    %3 = memref.load %arg5[%c0_5] : memref<1xf32, #tpu.memory_space<smem>>
    %c0_6 = arith.constant 0 : index
    %c0_7 = arith.constant 0 : index
    %4 = vector.load %arg1[%c0_6, %c0_7] : memref<128x10xf32, #tpu.memory_space<vmem>>, vector<128x10xf32>
    %cst = arith.constant dense<0.000000e+00> : vector<128x128xf32>
    %5 = tpu.matmul %4, %0, %cst {dimension_numbers = #tpu.dot_dimension_numbers<[1], [0], [0], [1], [0, 0, 1, 1], [], []>} : vector<128x10xf32>, vector<10x128xf32>, vector<128x128xf32> -> vector<128x128xf32>
    %6 = vector.broadcast %1 : vector<1x128xf32> to vector<128x128xf32>
    %7 = arith.addf %5, %6 : vector<128x128xf32>
    %cst_8 = arith.constant 0.000000e+00 : f32
    %8 = vector.broadcast %cst_8 : f32 to vector<128x128xf32>
    %9 = arith.maximumf %7, %8 : vector<128x128xf32>
    %10 = tpu.transpose %9, [1, 0] : vector<128x128xf32> -> vector<128x128xf32>
    %11 = vector.broadcast %2 : vector<128x1xf32> to vector<128x128xf32>
    %12 = arith.mulf %10, %11 : vector<128x128xf32>
    %cst_9 = arith.constant dense<0.000000e+00> : vector<128xf32>
    %13 = vector.multi_reduction <add>, %12, %cst_9 [0] : vector<128x128xf32> to vector<128xf32>
    %14 = vector.shape_cast %13 : vector<128xf32> to vector<1x128xf32>
    %15 = vector.broadcast %3 : f32 to vector<1x128xf32>
    %16 = arith.addf %14, %15 : vector<1x128xf32>
    %c0_10 = arith.constant 0 : index
    %c0_11 = arith.constant 0 : index
    %17 = vector.load %arg6[%c0_10, %c0_11] : memref<1x128xf32, #tpu.memory_space<vmem>>, vector<1x128xf32>
    tpu.vector_store %arg6[%c0_10, %c0_11], %16 {strides = array<i32>} : memref<1x128xf32, #tpu.memory_space<vmem>>, vector<1x128xf32>,
    return
  }
  func.func @transform_0(%arg0: i32) -> (i32, i32) {
    %c0_i32 = arith.constant 0 : i32
    %c0_i32_0 = arith.constant 0 : i32
    return %arg0, %c0_i32 : i32, i32
  }
  func.func @transform_1(%arg0: i32) -> (i32, i32) {
    %c0_i32 = arith.constant 0 : i32
    %c0_i32_0 = arith.constant 0 : i32
    %c0_i32_1 = arith.constant 0 : i32
    return %c0_i32, %c0_i32_0 : i32, i32
  }
  func.func @transform_2(%arg0: i32) -> (i32, i32) {
    %c0_i32 = arith.constant 0 : i32
    %c0_i32_0 = arith.constant 0 : i32
    %c0_i32_1 = arith.constant 0 : i32
    return %c0_i32, %c0_i32_0 : i32, i32
  }
  func.func @transform_3(%arg0: i32) -> (i32, i32) {
    %c0_i32 = arith.constant 0 : i32
    %c0_i32_0 = arith.constant 0 : i32
    %c0_i32_1 = arith.constant 0 : i32
    return %c0_i32, %c0_i32_0 : i32, i32
  }
  func.func @transform_4(%arg0: i32) -> i32 {
    %c0_i32 = arith.constant 0 : i32
    %c0_i32_0 = arith.constant 0 : i32
    return %c0_i32 : i32
  }
  func.func @transform_5(%arg0: i32) -> (i32, i32) {
    %c0_i32 = arith.constant 0 : i32
    %c0_i32_0 = arith.constant 0 : i32
    return %arg0, %c0_i32 : i32, i32
  }
}

</mosaic_0001>

<llo_original>
// kernel: hypermind_forward.1
$region0: #{hypermind_forward.1}
  #allocation0 [shape = 'u32[]', space=smem, size = 0x4, offset = 0x4, fixed_abs, tag = 'smem constant byte address 0x4 - core index']
  #allocation1 [shape = 'u32[144,128]{1,0:T(1,128)}', space=vmem, size = 0x12000, scoped, tag = 'internal scratch']
  #allocation2 [shape = 'f32[1]{0:T(128)S(6)}', space=smem, size = 0x200, scoped, tag = 'scoped memory for hypermind_forward.1']
  %s0 = inlined_call_operand.vmem [shape: f32[128,10], index: 0, kind: input, shape index: {}]
  %s1 = inlined_call_operand.vmem [shape: f32[10,128], index: 1, kind: input, shape index: {}]
  %s2 = inlined_call_operand.vmem [shape: f32[1,128], index: 2, kind: input, shape index: {}]
  %s3 = inlined_call_operand.vmem [shape: f32[128,1], index: 3, kind: input, shape index: {}]
  %s4 = inlined_call_operand.<no memory space> [shape: f32[1], index: 4, kind: input, shape index: {}]
  %s5 = inlined_call_operand.vmem [shape: f32[1,128], index: 5, kind: output, shape index: {}]
  %s6 = sld [smem:[#allocation0]]
  $region30: #{hypermind_forward.1} parent=0
    _
  %s8 = ssub.s32 1, %s6
  %s9 = scalar_select 0, %s8, %s6
  %10 = sst [smem:[#allocation2]] %s4
  // Predicated region
  $region2: #{hypermind_forward.1} parent=0 // pred_check
    _
  $region3: #{hypermind_forward.1} parent=0 // pred_check_branch
    %12 = sbr.rel (0) target = $region5
  $region4: #{hypermind_forward.1} parent=0 // pred_region
    _
  $region5: #{hypermind_forward.1} parent=0 // pred_fallthru
    _
  // Predicated region
  $region6: #{hypermind_forward.1} parent=0 // pred_check
    _
  $region7: #{hypermind_forward.1} parent=0 // pred_check_branch
    %14 = sbr.rel (0) target = $region9
  $region8: #{hypermind_forward.1} parent=0 // pred_region
    _
  $region9: #{hypermind_forward.1} parent=0 // pred_fallthru
    _
  // Predicated region
  $region10: #{hypermind_forward.1} parent=0 // pred_check
    _
  $region11: #{hypermind_forward.1} parent=0 // pred_check_branch
    %16 = sbr.rel (0) target = $region13
  $region12: #{hypermind_forward.1} parent=0 // pred_region
    _
  $region13: #{hypermind_forward.1} parent=0 // pred_fallthru
    _
  // Predicated region
  $region14: #{hypermind_forward.1} parent=0 // pred_check
    _
  $region15: #{hypermind_forward.1} parent=0 // pred_check_branch
    %18 = sbr.rel (0) target = $region17
  $region16: #{hypermind_forward.1} parent=0 // pred_region
    _
  $region17: #{hypermind_forward.1} parent=0 // pred_fallthru
    _
  // Predicated region
  $region18: #{hypermind_forward.1} parent=0 // pred_check
    _
  $region19: #{hypermind_forward.1} parent=0 // pred_check_branch
    %20 = sbr.rel (0) target = $region21
  $region20: #{hypermind_forward.1} parent=0 // pred_region
    _
  $region21: #{hypermind_forward.1} parent=0 // pred_fallthru
    _
  %v21 = vld [vmem:[%s1] sm:$0xff]
  %v22 = vld [vmem:[%s1 + $0x8] sm:$0x3]
  %v23 = vld [vmem:[%s2] sm:$0x1]
  %v24 = vld [vmem:[%s3] sm:$0xff]
  %v25 = vld [vmem:[%s3 + $0x8] sm:$0xff]
  %v26 = vld [vmem:[%s3 + $0x10] sm:$0xff]
  %v27 = vld [vmem:[%s3 + $0x18] sm:$0xff]
  %v28 = vld [vmem:[%s3 + $0x20] sm:$0xff]
  %v29 = vld [vmem:[%s3 + $0x28] sm:$0xff]
  %v30 = vld [vmem:[%s3 + $0x30] sm:$0xff]
  %v31 = vld [vmem:[%s3 + $0x38] sm:$0xff]
  %v32 = vld [vmem:[%s3 + $0x40] sm:$0xff]
  %v33 = vld [vmem:[%s3 + $0x48] sm:$0xff]
  %v34 = vld [vmem:[%s3 + $0x50] sm:$0xff]
  %v35 = vld [vmem:[%s3 + $0x58] sm:$0xff]
  %v36 = vld [vmem:[%s3 + $0x60] sm:$0xff]
  %v37 = vld [vmem:[%s3 + $0x68] sm:$0xff]
  %v38 = vld [vmem:[%s3 + $0x70] sm:$0xff]
  %v39 = vld [vmem:[%s3 + $0x78] sm:$0xff]
  %s40 = sld [smem:[#allocation2]]
  %v41 = vld [vmem:[%s0] sm:$0xff]
  %v42 = vld [vmem:[%s0 + $0x8] sm:$0xff]
  %v43 = vld [vmem:[%s0 + $0x10] sm:$0xff]
  %v44 = vld [vmem:[%s0 + $0x18] sm:$0xff]
  %v45 = vld [vmem:[%s0 + $0x20] sm:$0xff]
  %v46 = vld [vmem:[%s0 + $0x28] sm:$0xff]
  %v47 = vld [vmem:[%s0 + $0x30] sm:$0xff]
  %v48 = vld [vmem:[%s0 + $0x38] sm:$0xff]
  %v49 = vld [vmem:[%s0 + $0x40] sm:$0xff]
  %v50 = vld [vmem:[%s0 + $0x48] sm:$0xff]
  %v51 = vld [vmem:[%s0 + $0x50] sm:$0xff]
  %v52 = vld [vmem:[%s0 + $0x58] sm:$0xff]
  %v53 = vld [vmem:[%s0 + $0x60] sm:$0xff]
  %v54 = vld [vmem:[%s0 + $0x68] sm:$0xff]
  %v55 = vld [vmem:[%s0 + $0x70] sm:$0xff]
  %v56 = vld [vmem:[%s0 + $0x78] sm:$0xff]
  %v58 = vlaneseq
  %v59 = vshrl.u32 %v58, 7
  %v60 = vsub.s32 0, %v59
  %v61 = vrot.slane %v23, %v60
  %vm63 = vcmask 80896
  %v65 = vsel %vm63, %v41, 0
  %v68 = vsel %vm63, %v42, 0
  %v71 = vsel %vm63, %v43, 0
  %v74 = vsel %vm63, %v44, 0
  %v77 = vsel %vm63, %v45, 0
  %v80 = vsel %vm63, %v46, 0
  %v83 = vsel %vm63, %v47, 0
  %v86 = vsel %vm63, %v48, 0
  %v89 = vsel %vm63, %v49, 0
  %v92 = vsel %vm63, %v50, 0
  %v95 = vsel %vm63, %v51, 0
  %v98 = vsel %vm63, %v52, 0
  %v101 = vsel %vm63, %v53, 0
  %v104 = vsel %vm63, %v54, 0
  %v107 = vsel %vm63, %v55, 0
  %v110 = vsel %vm63, %v56, 0
  %vm112 = vcmask 1041408
  %v114 = vsel %vm112, %v22, 0
  %116 = vmatprep.subr.mxu0 0.0
  %117 = vmatpush1.msra.mxu0 %v21
  %118 = vmatprep.subr.mxu0 0.0
  %119 = vmatpush1.msra.mxu0 %v114
  %120 = vmatprep.subr.mxu0 0.0
  %121 = vmatpush1.msra.mxu0 0.0
  %122 = vmatprep.subr.mxu0 0.0
  %123 = vmatpush1.msra.mxu0 0.0
  %124 = vmatprep.subr.mxu0 0.0
  %125 = vmatpush1.msra.mxu0 0.0
  %126 = vmatprep.subr.mxu0 0.0
  %127 = vmatpush1.msra.mxu0 0.0
  %128 = vmatprep.subr.mxu0 0.0
  %129 = vmatpush1.msra.mxu0 0.0
  %130 = vmatprep.subr.mxu0 0.0
  %131 = vmatpush1.msra.mxu0 0.0
  %132 = vmatprep.subr.mxu0 0.0
  %133 = vmatpush1.msra.mxu0 0.0
  %134 = vmatprep.subr.mxu0 0.0
  %135 = vmatpush1.msra.mxu0 0.0
  %136 = vmatprep.subr.mxu0 0.0
  %137 = vmatpush1.msra.mxu0 0.0
  %138 = vmatprep.subr.mxu0 0.0
  %139 = vmatpush1.msra.mxu0 0.0
  %140 = vmatprep.subr.mxu0 0.0
  %141 = vmatpush1.msra.mxu0 0.0
  %142 = vmatprep.subr.mxu0 0.0
  %143 = vmatpush1.msra.mxu0 0.0
  %144 = vmatprep.subr.mxu0 0.0
  %145 = vmatpush1.msra.mxu0 0.0
  %146 = vmatprep.subr.mxu0 0.0
  %147 = vmatpush1.msra.mxu0 0.0
  %148 = vmatprep.subr.mxu0 0.0
  %149 = vmatpush1.msra.mxu0 0.0
  %150 = vmatprep.subr.mxu0 0.0
  %151 = vmatpush1.msra.mxu0 0.0
  %152 = vmatprep.subr.mxu0 0.0
  %153 = vmatpush1.msra.mxu0 0.0
  %154 = vmatprep.subr.mxu0 0.0
  %155 = vmatpush1.msra.mxu0 0.0
  %156 = vmatprep.subr.mxu0 0.0
  %157 = vmatpush1.msra.mxu0 0.0
  %158 = vmatprep.subr.mxu0 0.0
  %159 = vmatpush1.msra.mxu0 0.0
  %160 = vmatprep.subr.mxu0 0.0
  %161 = vmatpush1.msra.mxu0 0.0
  %162 = vmatprep.subr.mxu0 0.0
  %163 = vmatpush1.msra.mxu0 0.0
  %164 = vmatprep.subr.mxu0 0.0
  %165 = vmatpush1.msra.mxu0 0.0
  %166 = vmatprep.subr.mxu0 0.0
  %167 = vmatpush1.msra.mxu0 0.0
  %168 = vmatprep.subr.mxu0 0.0
  %169 = vmatpush1.msra.mxu0 0.0
  %170 = vmatprep.subr.mxu0 0.0
  %171 = vmatpush1.msra.mxu0 0.0
  %172 = vmatprep.subr.mxu0 0.0
  %173 = vmatpush1.msra.mxu0 0.0
  %174 = vmatprep.subr.mxu0 0.0
  %175 = vmatpush1.msra.mxu0 0.0
  %176 = vmatprep.subr.mxu0 0.0
  %177 = vmatpush1.msra.mxu0 0.0
  %178 = vmatprep.subr.mxu0 0.0
  %179 = vmatpush1.msra.mxu0 0.0
  %180 = vmatprep.mubr.f32.mxu0 0.0
  %181 = vmatmul.mubr.f32.gmra.mrb[0].mxu0 %v65
  %v182 = vpop.f32.mrb[0].mxu0
  %v183 = vadd.f32 %v61, %v182
  %v184 = vpop.f32.mrb[0].mxu0
  %185 = vmatprep.mubr.f32.mxu0 0.0
  %186 = vmatmul.mubr.f32.gmra.mrb[0].mxu0 %v68
  %v187 = vpop.f32.mrb[0].mxu0
  %v188 = vadd.f32 %v61, %v187
  %v189 = vpop.f32.mrb[0].mxu0
  %190 = vmatprep.mubr.f32.mxu0 0.0
  %191 = vmatmul.mubr.f32.gmra.mrb[0].mxu0 %v71
  %v192 = vpop.f32.mrb[0].mxu0
  %v193 = vadd.f32 %v61, %v192
  %v194 = vpop.f32.mrb[0].mxu0
  %195 = vmatprep.mubr.f32.mxu0 0.0
  %196 = vmatmul.mubr.f32.gmra.mrb[0].mxu0 %v74
  %v197 = vpop.f32.mrb[0].mxu0
  %v198 = vadd.f32 %v61, %v197
  %v199 = vpop.f32.mrb[0].mxu0
  %200 = vmatprep.mubr.f32.mxu0 0.0
  %201 = vmatmul.mubr.f32.gmra.mrb[0].mxu0 %v77
  %v202 = vpop.f32.mrb[0].mxu0
  %v203 = vadd.f32 %v61, %v202
  %v204 = vpop.f32.mrb[0].mxu0
  %205 = vmatprep.mubr.f32.mxu0 0.0
  %206 = vmatmul.mubr.f32.gmra.mrb[0].mxu0 %v80
  %v207 = vpop.f32.mrb[0].mxu0
  %v208 = vadd.f32 %v61, %v207
  %v209 = vpop.f32.mrb[0].mxu0
  %210 = vmatprep.mubr.f32.mxu0 0.0
  %211 = vmatmul.mubr.f32.gmra.mrb[0].mxu0 %v83
  %v212 = vpop.f32.mrb[0].mxu0
  %v213 = vadd.f32 %v61, %v212
  %v214 = vpop.f32.mrb[0].mxu0
  %215 = vmatprep.mubr.f32.mxu0 0.0
  %216 = vmatmul.mubr.f32.gmra.mrb[0].mxu0 %v86
  %v217 = vpop.f32.mrb[0].mxu0
  %v218 = vadd.f32 %v61, %v217
  %v219 = vpop.f32.mrb[0].mxu0
  %220 = vmatprep.mubr.f32.mxu0 0.0
  %221 = vmatmul.mubr.f32.gmra.mrb[0].mxu0 %v89
  %v222 = vpop.f32.mrb[0].mxu0
  %v223 = vadd.f32 %v61, %v222
  %v224 = vpop.f32.mrb[0].mxu0
  %225 = vmatprep.mubr.f32.mxu0 0.0
  %226 = vmatmul.mubr.f32.gmra.mrb[0].mxu0 %v92
  %v227 = vpop.f32.mrb[0].mxu0
  %v228 = vadd.f32 %v61, %v227
  %v229 = vpop.f32.mrb[0].mxu0
  %230 = vmatprep.mubr.f32.mxu0 0.0
  %231 = vmatmul.mubr.f32.gmra.mrb[0].mxu0 %v95
  %v232 = vpop.f32.mrb[0].mxu0
  %v233 = vadd.f32 %v61, %v232
  %v234 = vpop.f32.mrb[0].mxu0
  %235 = vmatprep.mubr.f32.mxu0 0.0
  %236 = vmatmul.mubr.f32.gmra.mrb[0].mxu0 %v98
  %v237 = vpop.f32.mrb[0].mxu0
  %v238 = vadd.f32 %v61, %v237
  %v239 = vpop.f32.mrb[0].mxu0
  %240 = vmatprep.mubr.f32.mxu0 0.0
  %241 = vmatmul.mubr.f32.gmra.mrb[0].mxu0 %v101
  %v242 = vpop.f32.mrb[0].mxu0
  %v243 = vadd.f32 %v61, %v242
  %v244 = vpop.f32.mrb[0].mxu0
  %245 = vmatprep.mubr.f32.mxu0 0.0
  %246 = vmatmul.mubr.f32.gmra.mrb[0].mxu0 %v104
  %v247 = vpop.f32.mrb[0].mxu0
  %v248 = vadd.f32 %v61, %v247
  %v249 = vpop.f32.mrb[0].mxu0
  %250 = vmatprep.mubr.f32.mxu0 0.0
  %251 = vmatmul.mubr.f32.gmra.mrb[0].mxu0 %v107
  %v252 = vpop.f32.mrb[0].mxu0
  %v253 = vadd.f32 %v61, %v252
  %v254 = vpop.f32.mrb[0].mxu0
  %255 = vmatprep.mubr.f32.mxu0 0.0
  %256 = vmatmul.mubr.f32.gmra.mrb[0].mxu0 %v110
  %v257 = vpop.f32.mrb[0].mxu0
  %v258 = vadd.f32 %v61, %v257
  %v259 = vpop.f32.mrb[0].mxu0
  %260 = vdwg.mxu0
  %v261 = vmax.f32 %v183, 0.0
  %v262 = vmax.f32 %v188, 0.0
  %v263 = vmax.f32 %v193, 0.0
  %v264 = vmax.f32 %v198, 0.0
  %v265 = vmax.f32 %v203, 0.0
  %v266 = vmax.f32 %v208, 0.0
  %v267 = vmax.f32 %v213, 0.0
  %v268 = vmax.f32 %v218, 0.0
  %v269 = vmax.f32 %v223, 0.0
  %v270 = vmax.f32 %v228, 0.0
  %v271 = vmax.f32 %v233, 0.0
  %v272 = vmax.f32 %v238, 0.0
  %v273 = vmax.f32 %v243, 0.0
  %v274 = vmax.f32 %v248, 0.0
  %v275 = vmax.f32 %v253, 0.0
  %v276 = vmax.f32 %v258, 0.0
  %277 = vxpose.xlu0.b32.start [1/16] %v261, 128
  %278 = vxpose.xlu0.b32.cont [2/16] %v262, 128
  %279 = vxpose.xlu0.b32.cont [3/16] %v263, 128
  %280 = vxpose.xlu0.b32.cont [4/16] %v264, 128
  %281 = vxpose.xlu0.b32.cont [5/16] %v265, 128
  %282 = vxpose.xlu0.b32.cont [6/16] %v266, 128
  %283 = vxpose.xlu0.b32.cont [7/16] %v267, 128
  %284 = vxpose.xlu0.b32.cont [8/16] %v268, 128
  %285 = vxpose.xlu0.b32.cont [9/16] %v269, 128
  %286 = vxpose.xlu0.b32.cont [10/16] %v270, 128
  %287 = vxpose.xlu0.b32.cont [11/16] %v271, 128
  %288 = vxpose.xlu0.b32.cont [12/16] %v272, 128
  %289 = vxpose.xlu0.b32.cont [13/16] %v273, 128
  %290 = vxpose.xlu0.b32.cont [14/16] %v274, 128
  %291 = vxpose.xlu0.b32.cont [15/16] %v275, 128
  %292 = vxpose.xlu0.b32.end [16/16] %v276, 128
  %v293 = vpop.trf.xlu0
  %v294 = vpop.trf.xlu0
  %v295 = vpop.trf.xlu0
  %v296 = vpop.trf.xlu0
  %v297 = vpop.trf.xlu0
  %v298 = vpop.trf.xlu0
  %v299 = vpop.trf.xlu0
  %v300 = vpop.trf.xlu0
  %v301 = vpop.trf.xlu0
  %v302 = vpop.trf.xlu0
  %v303 = vpop.trf.xlu0
  %v304 = vpop.trf.xlu0
  %v305 = vpop.trf.xlu0
  %v306 = vpop.trf.xlu0
  %v307 = vpop.trf.xlu0
  %v308 = vpop.trf.xlu0
  %310 = vset.pattern.permute.xlu0 0
  %311 = vperm.xlu0 %310, %v24
  %v312 = vpop.permute.xlu0 %311
  %315 = vset.pattern.permute.xlu0 0
  %316 = vperm.xlu0 %315, %v25
  %v317 = vpop.permute.xlu0 %316
  %320 = vset.pattern.permute.xlu0 0
  %321 = vperm.xlu0 %320, %v26
  %v322 = vpop.permute.xlu0 %321
  %325 = vset.pattern.permute.xlu0 0
  %326 = vperm.xlu0 %325, %v27
  %v327 = vpop.permute.xlu0 %326
  %330 = vset.pattern.permute.xlu0 0
  %331 = vperm.xlu0 %330, %v28
  %v332 = vpop.permute.xlu0 %331
  %335 = vset.pattern.permute.xlu0 0
  %336 = vperm.xlu0 %335, %v29
  %v337 = vpop.permute.xlu0 %336
  %340 = vset.pattern.permute.xlu0 0
  %341 = vperm.xlu0 %340, %v30
  %v342 = vpop.permute.xlu0 %341
  %345 = vset.pattern.permute.xlu0 0
  %346 = vperm.xlu0 %345, %v31
  %v347 = vpop.permute.xlu0 %346
  %350 = vset.pattern.permute.xlu0 0
  %351 = vperm.xlu0 %350, %v32
  %v352 = vpop.permute.xlu0 %351
  %355 = vset.pattern.permute.xlu0 0
  %356 = vperm.xlu0 %355, %v33
  %v357 = vpop.permute.xlu0 %356
  %360 = vset.pattern.permute.xlu0 0
  %361 = vperm.xlu0 %360, %v34
  %v362 = vpop.permute.xlu0 %361
  %365 = vset.pattern.permute.xlu0 0
  %366 = vperm.xlu0 %365, %v35
  %v367 = vpop.permute.xlu0 %366
  %370 = vset.pattern.permute.xlu0 0
  %371 = vperm.xlu0 %370, %v36
  %v372 = vpop.permute.xlu0 %371
  %375 = vset.pattern.permute.xlu0 0
  %376 = vperm.xlu0 %375, %v37
  %v377 = vpop.permute.xlu0 %376
  %380 = vset.pattern.permute.xlu0 0
  %381 = vperm.xlu0 %380, %v38
  %v382 = vpop.permute.xlu0 %381
  %385 = vset.pattern.permute.xlu0 0
  %386 = vperm.xlu0 %385, %v39
  %v387 = vpop.permute.xlu0 %386
  %v389 = vmul.f32 %v293, %v312
  %v390 = vmul.f32 %v294, %v317
  %v391 = vmul.f32 %v295, %v322
  %v392 = vmul.f32 %v296, %v327
  %v393 = vmul.f32 %v297, %v332
  %v394 = vmul.f32 %v298, %v337
  %v395 = vmul.f32 %v299, %v342
  %v396 = vmul.f32 %v300, %v347
  %v397 = vmul.f32 %v301, %v352
  %v398 = vmul.f32 %v302, %v357
  %v399 = vmul.f32 %v303, %v362
  %v400 = vmul.f32 %v304, %v367
  %v401 = vmul.f32 %v305, %v372
  %v402 = vmul.f32 %v306, %v377
  %v403 = vmul.f32 %v307, %v382
  %v404 = vmul.f32 %v308, %v387
  %v405 = vadd.f32 %v389, %v390
  %v406 = vadd.f32 %v405, %v391
  %v407 = vadd.f32 %v406, %v392
  %v408 = vadd.f32 %v407, %v393
  %v409 = vadd.f32 %v408, %v394
  %v410 = vadd.f32 %v409, %v395
  %v411 = vadd.f32 %v410, %v396
  %v412 = vadd.f32 %v411, %v397
  %v413 = vadd.f32 %v412, %v398
  %v414 = vadd.f32 %v413, %v399
  %v415 = vadd.f32 %v414, %v400
  %v416 = vadd.f32 %v415, %v401
  %v417 = vadd.f32 %v416, %v402
  %v418 = vadd.f32 %v417, %v403
  %v419 = vadd.f32 %v418, %v404
  %v420 = vrot.slane %v419, 4
  %v421 = vadd.f32 %v419, %v420
  %v422 = vrot.slane %v421, 2
  %v423 = vadd.f32 %v421, %v422
  %v424 = vrot.slane %v423, 1
  %v425 = vadd.f32 %v423, %v424
  %v426 = vstv %s40
  %v427 = vadd.f32 %v425, %v426
  %428 = vst [vmem:[%s5] sm:$0x1] %v427
  // Predicated region
  $region22: #{hypermind_forward.1} parent=0 // pred_check
    _
  $region23: #{hypermind_forward.1} parent=0 // pred_check_branch
    %430 = sbr.rel (0) target = $region25
  $region24: #{hypermind_forward.1} parent=0 // pred_region
    _
  $region25: #{hypermind_forward.1} parent=0 // pred_fallthru
    _
  // Predicated region
  $region26: #{hypermind_forward.1} parent=0 // pred_check
    _
  $region27: #{hypermind_forward.1} parent=0 // pred_check_branch
    %432 = sbr.rel (0) target = $region29
  $region28: #{hypermind_forward.1} parent=0 // pred_region
    _
  $region29: #{hypermind_forward.1} parent=0 // pred_fallthru
    _

</llo_original>
